<compile_context>
chip_gen: v5e
topology: v5e:2x2
jax: 0.10.0
libtpu: 0.0.40
codegen_flags: <defaults>
</compile_context>

<pallas_src>
import functools

import jax
import jax.numpy as jnp
from jax.experimental import pallas as pl
from jax.experimental.pallas import tpu as pltpu


# ---------------------------------------------------------------------------
# Per-generation tile / VMEM budgets.
# ---------------------------------------------------------------------------
def _vmem_budget():
    """v5e/v6e have 128 MiB VMEM per TensorCore, v7x only 64 MiB."""
    try:
        cap = int(pltpu.get_tpu_info().vmem_capacity_bytes)
    except Exception:  # pragma: no cover - fall back to the 128 MiB generations
        cap = 128 << 20
    if cap >= (96 << 20):          # v5e / v6e
        return {"apply_tile": 8 << 20, "apply_limit": 64 << 20,
                "mask_tile": 2 << 20, "mask_limit": 32 << 20}
    return {"apply_tile": 4 << 20, "apply_limit": 44 << 20,   # v7x
            "mask_tile": 1 << 20, "mask_limit": 24 << 20}


# ---------------------------------------------------------------------------
# Pass 1: block-mask dilation (stride-1 max pool of the Bernoulli seed mask).
# ---------------------------------------------------------------------------
def _block_mask_kernel(mpad_ref, bm_ref, psum_ref, *, H, W, bs):
    # mpad_ref: (Nt, H+bs-1, W+bs-1) bf16 zero-padded seed mask (Nt images)
    # bm_ref:   (Nt, H, W)           bf16 block mask (1 = keep, 0 = drop)
    # psum_ref: (1, 8, 128)          f32  per-grid-step keep count (broadcast)
    m = mpad_ref[...]                                   # stay in bf16 (VPU max)
    # Separable stride-1 max pool over a (bs, bs) window: bs sublane (row)
    # shifts followed by bs lane (column) shifts -> 2*bs maxima instead of bs**2.
    rp = m[:, 0:H, :]
    for di in range(1, bs):
        rp = jnp.maximum(rp, m[:, di:di + H, :])
    pooled = rp[:, :, 0:W]
    for dj in range(1, bs):
        pooled = jnp.maximum(pooled, rp[:, :, dj:dj + W])
    bm = (1.0 - pooled).astype(bm_ref.dtype)
    bm_ref[...] = bm
    # Per-tile partial keep-count so glue never re-reads block_mask from HBM.
    s = jnp.sum(bm.astype(jnp.float32))
    psum_ref[...] = jnp.broadcast_to(s, psum_ref.shape)


# ---------------------------------------------------------------------------
# Pass 2a: standalone DropBlock apply  out = x * block_mask * scale.
# ---------------------------------------------------------------------------
def _apply_kernel(scale_ref, x_ref, bm_ref, o_ref):
    # scale_ref: (1,) f32 in SMEM
    # x_ref/o_ref: (Nb, Ct, HW);  bm_ref: (Nb, 1, HW) bf16 (broadcast over Ct)
    bm = bm_ref[...].astype(jnp.float32) * scale_ref[0]      # exactly 0 or scale
    o_ref[...] = (x_ref[...].astype(jnp.float32) * bm).astype(o_ref.dtype)


# ---------------------------------------------------------------------------
# Pass 2b: fused DropBlock apply + BatchNorm affine + ReLU.
#   out = relu((x * bm) * coef_c + bias_c)
# where coef_c folds the DropBlock rescale and the BN scale, bias_c the BN shift.
# ---------------------------------------------------------------------------
def _apply_bn_relu_kernel(coef_ref, bias_ref, x_ref, bm_ref, o_ref):
    # coef_ref/bias_ref: (1, Ct, 1) f32 per-channel scale/shift
    # x_ref/o_ref: (Nb, Ct, HW);  bm_ref: (Nb, 1, HW) bf16 (broadcast over Ct)
    y = x_ref[...].astype(jnp.float32) * bm_ref[...].astype(jnp.float32)
    y = y * coef_ref[...] + bias_ref[...]
    o_ref[...] = jnp.maximum(y, 0.0).astype(o_ref.dtype)


# ---------------------------------------------------------------------------
# Tile pickers.
# ---------------------------------------------------------------------------
def _pick_mask_n_tile(N, img_bytes, target_bytes):
    n_tile = max(1, min(N, target_bytes // max(img_bytes, 1)))
    while N % n_tile:
        n_tile -= 1
    # Keep >= 2 grid steps when possible (v7x has 2 TensorCores per chip).
    while N // n_tile < 2 and n_tile > 1:
        n_tile -= 1
        while N % n_tile:
            n_tile -= 1
    return n_tile


def _legal_c_tiles(C):
    """Channel-tile sizes keeping (.., c_tile, HW) blocks layout-legal:
    the full channel extent, or a multiple of 8 that divides C."""
    tiles = [d for d in range(8, C, 8) if C % d == 0]
    tiles.append(C)
    return tiles


def _pick_apply_tiles(N, C, HW, itemsize, target_bytes):
    """Pick (n_blk, c_tile) for the flattened (N, C, HW) elementwise passes.

    Blocks are kept as large as the per-buffer budget allows, but the grid is
    forced to >= 2 steps (prefer splitting C) so both v7x TensorCores get work.
    """
    per_c = max(HW * itemsize, 1)
    legal_c = _legal_c_tiles(C)
    c_tile = legal_c[0]
    for ct in legal_c:
        if ct * per_c <= target_bytes:
            c_tile = ct
    n_blk = 1
    if c_tile == C:
        n_blk = max(1, min(N, target_bytes // (C * per_c)))
        while N % n_blk:
            n_blk -= 1

    def n_steps():
        return (N // n_blk) * (C // c_tile)

    while n_steps() < 2:
        ci = legal_c.index(c_tile)
        if ci > 0:                       # prefer splitting channels
            c_tile = legal_c[ci - 1]
        elif n_blk > 1:                  # then images
            n_blk -= 1
            while N % n_blk:
                n_blk -= 1
        else:
            break
    return n_blk, c_tile


# ---------------------------------------------------------------------------
# Shared pass 1: block mask + rescale factor.
# ---------------------------------------------------------------------------
def _dropblock_mask(N, H, W, key, drop_prob, block_size, budget):
    bs = int(block_size)
    # gamma matches the PyTorch spec exactly: drop_prob / block_size**2
    # (the reference module applies no valid-region correction).
    gamma = drop_prob / (bs ** 2)

    # Bernoulli seed mask (RNG glue), bf16 (0/1 exact).  Zero padding reproduces
    # F.max_pool2d(padding=bs//2); the asymmetric pad bakes in PyTorch's
    # [:-1, :-1] crop for even block_size.
    # TODO(synk): move the draw in-kernel with pltpu.prng_seed/prng_random_bits
    # to avoid materializing mask/mpad in HBM (kept in glue for verifiability).
    mask = (jax.random.uniform(key, (N, H, W)) < gamma).astype(jnp.bfloat16)
    pad_top = bs // 2
    pad_bot = bs - 1 - pad_top
    mpad = jnp.pad(mask, ((0, 0), (pad_top, pad_bot), (pad_top, pad_bot)))
    Hp, Wp = H + bs - 1, W + bs - 1

    n_tile = _pick_mask_n_tile(N, Hp * Wp * mpad.dtype.itemsize,
                               budget["mask_tile"])
    grid_g = N // n_tile
    block_mask, keep_part = pl.pallas_call(
        functools.partial(_block_mask_kernel, H=H, W=W, bs=bs),
        grid=(grid_g,),
        in_specs=[pl.BlockSpec((n_tile, Hp, Wp), lambda i: (i, 0, 0))],
        out_specs=[
            pl.BlockSpec((n_tile, H, W), lambda i: (i, 0, 0)),
            pl.BlockSpec((1, 8, 128), lambda i: (i, 0, 0)),
        ],
        out_shape=(
            jax.ShapeDtypeStruct((N, H, W), jnp.bfloat16),
            jax.ShapeDtypeStruct((grid_g, 8, 128), jnp.float32),
        ),
        compiler_params=pltpu.CompilerParams(
            dimension_semantics=("parallel",),
            vmem_limit_bytes=budget["mask_limit"]),
    )(mpad)

    keep = jnp.sum(keep_part[:, 0, 0])
    numel = jnp.float32(N * H * W)
    # Guard the fully-dropped corner case (PyTorch would propagate NaN: 0/0).
    scale = jnp.where(keep > 0.0, numel / keep, jnp.float32(0.0))
    return block_mask, scale


# ---------------------------------------------------------------------------
# Standalone DropBlock2D forward (training mode) — matches the PyTorch module.
# ---------------------------------------------------------------------------
def dropblock2d(x, key, drop_prob, block_size, training=True):
    assert x.ndim == 4, "Expected (N, C, H, W)"
    if (not training) or drop_prob == 0.0:
        return x

    N, C, H, W = x.shape
    HW = H * W
    budget = _vmem_budget()
    block_mask, scale = _dropblock_mask(N, H, W, key, drop_prob, block_size,
                                        budget)

    # Lane-dense apply pass over a flattened (N, C, H*W) view.  C stays the
    # innermost grid axis so the (n_blk, 1, HW) block-mask tile is not re-DMA'd
    # between consecutive steps.
    # TODO(synk): for feature maps where H*W is not a multiple of 128, a
    # channels-last layout would keep stores unmasked.
    x_flat = x.reshape(N, C, HW)
    bm_flat = block_mask.reshape(N, 1, HW)
    n_blk, c_tile = _pick_apply_tiles(N, C, HW, x.dtype.itemsize,
                                      budget["apply_tile"])
    out = pl.pallas_call(
        _apply_kernel,
        grid=(N // n_blk, C // c_tile),
        in_specs=[
            pl.BlockSpec(memory_space=pltpu.MemorySpace.SMEM),
            pl.BlockSpec((n_blk, c_tile, HW), lambda n, c: (n, c, 0)),
            pl.BlockSpec((n_blk, 1, HW), lambda n, c: (n, 0, 0)),
        ],
        out_specs=pl.BlockSpec((n_blk, c_tile, HW), lambda n, c: (n, c, 0)),
        out_shape=jax.ShapeDtypeStruct((N, C, HW), x.dtype),
        compiler_params=pltpu.CompilerParams(
            dimension_semantics=("parallel", "parallel"),
            vmem_limit_bytes=budget["apply_limit"]),
    )(scale.reshape(1), x_flat, bm_flat)
    return out.reshape(N, C, H, W)


# ---------------------------------------------------------------------------
# Fused DropBlock2D -> BatchNorm2d (training stats) -> ReLU.
# ---------------------------------------------------------------------------
def dropblock_bn_relu(x, key, bn_gamma, bn_beta, drop_prob, block_size,
                      training=True, eps=1e-5):
    assert x.ndim == 4, "Expected (N, C, H, W)"
    N, C, H, W = x.shape
    if (not training) or drop_prob == 0.0:
        return _batchnorm_relu(x, bn_gamma, bn_beta, eps)

    HW = H * W
    budget = _vmem_budget()
    block_mask, scale = _dropblock_mask(N, H, W, key, drop_prob, block_size,
                                        budget)

    # Batch-norm statistics of y = x * bm * scale via one fused XLA reduction
    # (reads x / bm once, writes only per-channel scalars).  Together with the
    # fused apply kernel below this removes the DropBlock-only activation
    # round-trip entirely.
    xf = x.astype(jnp.float32)
    bm4 = block_mask[:, None, :, :].astype(jnp.float32)
    cnt = jnp.float32(N * HW)
    s1 = jnp.sum(xf * bm4, axis=(0, 2, 3))
    s2 = jnp.sum(jnp.square(xf) * bm4, axis=(0, 2, 3))
    mean = scale * s1 / cnt
    var = (scale * scale) * s2 / cnt - jnp.square(mean)
    a = bn_gamma.astype(jnp.float32) * jax.lax.rsqrt(jnp.maximum(var, 0.0) + eps)
    coef = (a * scale).reshape(1, C, 1)                   # fold DropBlock scale
    bias = (bn_beta.astype(jnp.float32) - a * mean).reshape(1, C, 1)

    x_flat = x.reshape(N, C, HW)
    bm_flat = block_mask.reshape(N, 1, HW)
    n_blk, c_tile = _pick_apply_tiles(N, C, HW, x.dtype.itemsize,
                                      budget["apply_tile"])
    out = pl.pallas_call(
        _apply_bn_relu_kernel,
        grid=(N // n_blk, C // c_tile),      # C innermost: bm tile not re-DMA'd
        in_specs=[
            pl.BlockSpec((1, c_tile, 1), lambda n, c: (0, c, 0)),
            pl.BlockSpec((1, c_tile, 1), lambda n, c: (0, c, 0)),
            pl.BlockSpec((n_blk, c_tile, HW), lambda n, c: (n, c, 0)),
            pl.BlockSpec((n_blk, 1, HW), lambda n, c: (n, 0, 0)),
        ],
        out_specs=pl.BlockSpec((n_blk, c_tile, HW), lambda n, c: (n, c, 0)),
        out_shape=jax.ShapeDtypeStruct((N, C, HW), x.dtype),
        # The conv output is dead after this op -> donate its buffer.
        input_output_aliases={2: 0},
        compiler_params=pltpu.CompilerParams(
            dimension_semantics=("parallel", "parallel"),
            vmem_limit_bytes=budget["apply_limit"]),
    )(coef, bias, x_flat, bm_flat)
    return out.reshape(N, C, H, W)


# ---------------------------------------------------------------------------
# Pure-JAX references (replicate the PyTorch forward with the same RNG draw).
# ---------------------------------------------------------------------------
def _dropblock2d_ref(x, key, drop_prob, block_size, training=True):
    if (not training) or drop_prob == 0.0:
        return x
    N, C, H, W = x.shape
    bs = int(block_size)
    gamma = drop_prob / (bs ** 2)
    mask = (jax.random.uniform(key, (N, H, W)) < gamma).astype(jnp.float32)
    pad_top = bs // 2
    pad_bot = bs - 1 - pad_top
    mpad = jnp.pad(mask, ((0, 0), (pad_top, pad_bot), (pad_top, pad_bot)))
    pooled = jnp.zeros((N, H, W), jnp.float32)
    for di in range(bs):
        for dj in range(bs):
            pooled = jnp.maximum(pooled, mpad[:, di:di + H, dj:dj + W])
    bm = 1.0 - pooled
    out = x * bm[:, None, :, :]
    out = out * bm.size / jnp.sum(bm)
    return out


def _conv3x3(x, w, b):
    y = jax.lax.conv_general_dilated(
        x, w, window_strides=(1, 1), padding=((1, 1), (1, 1)),
        dimension_numbers=("NCHW", "OIHW", "NCHW"))
    return y + b[None, :, None, None]


def _batchnorm_relu(x, g, b, eps=1e-5):
    mean = jnp.mean(x, axis=(0, 2, 3), keepdims=True)
    var = jnp.var(x, axis=(0, 2, 3), keepdims=True)
    y = (x - mean) * jax.lax.rsqrt(var + eps)
    y = y * g[None, :, None, None] + b[None, :, None, None]
    return jnp.maximum(y, 0.0)


# ---------------------------------------------------------------------------
# conv_drop_block forward: conv (XLA) -> fused Pallas DropBlock+BN+ReLU, twice.
# ---------------------------------------------------------------------------
def conv_drop_block_forward(x, params, key, drop_prob=0.9, block_size=7,
                            training=True, use_pallas=True):
    k1, k2 = jax.random.split(key)

    y = _conv3x3(x, params["w1"], params["b1"])
    if use_pallas:
        y = dropblock_bn_relu(y, k1, params["g1"], params["be1"],
                              drop_prob, block_size, training)
    else:
        y = _dropblock2d_ref(y, k1, drop_prob, block_size, training)
        y = _batchnorm_relu(y, params["g1"], params["be1"])

    y = _conv3x3(y, params["w2"], params["b2"])
    if use_pallas:
        y = dropblock_bn_relu(y, k2, params["g2"], params["be2"],
                              drop_prob, block_size, training)
    else:
        y = _dropblock2d_ref(y, k2, drop_prob, block_size, training)
        y = _batchnorm_relu(y, params["g2"], params["be2"])
    return y


if __name__ == "__main__":
    root = jax.random.PRNGKey(0)
    kx, kdb1, kdb2, kparams, kblk = jax.random.split(root, 5)

    # --- standalone DropBlock2D kernel checks (odd and even block sizes) ---
    N, C, H, W = 2, 4, 16, 16
    x = jax.random.normal(kx, (N, C, H, W), dtype=jnp.float32)
    for kmask, dp, bsz in ((kdb1, 0.4, 7), (kdb2, 0.4, 4)):
        run = jax.jit(functools.partial(dropblock2d, drop_prob=dp,
                                        block_size=bsz))
        out = jax.block_until_ready(run(x, kmask))
        ref = _dropblock2d_ref(x, kmask, dp, bsz)
        assert out.shape == x.shape
        assert jnp.allclose(out, ref, rtol=1e-5, atol=1e-5), "dropblock mismatch"

    # --- full conv_drop_block forward with the fused Pallas DropBlock inside ---
    in_ch, out_ch = 4, 8
    kw1, kw2 = jax.random.split(kparams)
    params = dict(
        w1=0.1 * jax.random.normal(kw1, (out_ch, in_ch, 3, 3), jnp.float32),
        b1=jnp.zeros((out_ch,), jnp.float32),
        g1=jnp.ones((out_ch,), jnp.float32),
        be1=jnp.zeros((out_ch,), jnp.float32),
        w2=0.1 * jax.random.normal(kw2, (out_ch, out_ch, 3, 3), jnp.float32),
        b2=jnp.zeros((out_ch,), jnp.float32),
        g2=jnp.ones((out_ch,), jnp.float32),
        be2=jnp.zeros((out_ch,), jnp.float32),
    )
    fwd = jax.jit(functools.partial(conv_drop_block_forward,
                                    drop_prob=0.4, block_size=7, training=True))
    y = jax.block_until_ready(fwd(x, params, kblk))
    y_ref = conv_drop_block_forward(x, params, kblk, drop_prob=0.4,
                                    block_size=7, training=True,
                                    use_pallas=False)
    assert y.shape == (N, out_ch, H, W)
    assert jnp.allclose(y, y_ref, rtol=1e-4, atol=1e-4), "conv_drop_block mismatch"

    print("KERNEL_OK")
</pallas_src>

<mosaic_0001>
module attributes {stable_mosaic.version = 11 : i64} {
  func.func @_block_mask_kernel(%arg0: i32, %arg1: memref<1x22x22xbf16, #tpu.memory_space<vmem>>, %arg2: memref<1x16x16xbf16, #tpu.memory_space<vmem>>, %arg3: memref<1x8x128xf32, #tpu.memory_space<vmem>>) attributes {dimension_semantics = [#tpu.dimension_semantics<parallel>], iteration_bounds = array<i64: 2>, scalar_prefetch = 0 : i64, scratch_operands = 0 : i64, tpu.core_type = #tpu.core_type<tc>, window_params = [{transform_indices = @transform_0, window_bounds = array<i64: 1, 22, 22>}, {transform_indices = @transform_1, window_bounds = array<i64: 1, 16, 16>}, {transform_indices = @transform_2, window_bounds = array<i64: 1, 8, 128>}]} {
    %c0 = arith.constant 0 : index
    %c0_0 = arith.constant 0 : index
    %c0_1 = arith.constant 0 : index
    %0 = vector.load %arg1[%c0, %c0_0, %c0_1] : memref<1x22x22xbf16, #tpu.memory_space<vmem>>, vector<1x22x22xbf16>
    %1 = vector.extract_strided_slice %0 {offsets = [0, 0, 0], sizes = [1, 16, 22], strides = [1, 1, 1]} : vector<1x22x22xbf16> to vector<1x16x22xbf16>
    %2 = vector.extract_strided_slice %0 {offsets = [0, 1, 0], sizes = [1, 16, 22], strides = [1, 1, 1]} : vector<1x22x22xbf16> to vector<1x16x22xbf16>
    %3 = arith.maximumf %1, %2 : vector<1x16x22xbf16>
    %4 = vector.extract_strided_slice %0 {offsets = [0, 2, 0], sizes = [1, 16, 22], strides = [1, 1, 1]} : vector<1x22x22xbf16> to vector<1x16x22xbf16>
    %5 = arith.maximumf %3, %4 : vector<1x16x22xbf16>
    %6 = vector.extract_strided_slice %0 {offsets = [0, 3, 0], sizes = [1, 16, 22], strides = [1, 1, 1]} : vector<1x22x22xbf16> to vector<1x16x22xbf16>
    %7 = arith.maximumf %5, %6 : vector<1x16x22xbf16>
    %8 = vector.extract_strided_slice %0 {offsets = [0, 4, 0], sizes = [1, 16, 22], strides = [1, 1, 1]} : vector<1x22x22xbf16> to vector<1x16x22xbf16>
    %9 = arith.maximumf %7, %8 : vector<1x16x22xbf16>
    %10 = vector.extract_strided_slice %0 {offsets = [0, 5, 0], sizes = [1, 16, 22], strides = [1, 1, 1]} : vector<1x22x22xbf16> to vector<1x16x22xbf16>
    %11 = arith.maximumf %9, %10 : vector<1x16x22xbf16>
    %12 = vector.extract_strided_slice %0 {offsets = [0, 6, 0], sizes = [1, 16, 22], strides = [1, 1, 1]} : vector<1x22x22xbf16> to vector<1x16x22xbf16>
    %13 = arith.maximumf %11, %12 : vector<1x16x22xbf16>
    %14 = vector.extract_strided_slice %13 {offsets = [0, 0, 0], sizes = [1, 16, 16], strides = [1, 1, 1]} : vector<1x16x22xbf16> to vector<1x16x16xbf16>
    %15 = vector.extract_strided_slice %13 {offsets = [0, 0, 1], sizes = [1, 16, 16], strides = [1, 1, 1]} : vector<1x16x22xbf16> to vector<1x16x16xbf16>
    %16 = arith.maximumf %14, %15 : vector<1x16x16xbf16>
    %17 = vector.extract_strided_slice %13 {offsets = [0, 0, 2], sizes = [1, 16, 16], strides = [1, 1, 1]} : vector<1x16x22xbf16> to vector<1x16x16xbf16>
    %18 = arith.maximumf %16, %17 : vector<1x16x16xbf16>
    %19 = vector.extract_strided_slice %13 {offsets = [0, 0, 3], sizes = [1, 16, 16], strides = [1, 1, 1]} : vector<1x16x22xbf16> to vector<1x16x16xbf16>
    %20 = arith.maximumf %18, %19 : vector<1x16x16xbf16>
    %21 = vector.extract_strided_slice %13 {offsets = [0, 0, 4], sizes = [1, 16, 16], strides = [1, 1, 1]} : vector<1x16x22xbf16> to vector<1x16x16xbf16>
    %22 = arith.maximumf %20, %21 : vector<1x16x16xbf16>
    %23 = vector.extract_strided_slice %13 {offsets = [0, 0, 5], sizes = [1, 16, 16], strides = [1, 1, 1]} : vector<1x16x22xbf16> to vector<1x16x16xbf16>
    %24 = arith.maximumf %22, %23 : vector<1x16x16xbf16>
    %25 = vector.extract_strided_slice %13 {offsets = [0, 0, 6], sizes = [1, 16, 16], strides = [1, 1, 1]} : vector<1x16x22xbf16> to vector<1x16x16xbf16>
    %26 = arith.maximumf %24, %25 : vector<1x16x16xbf16>
    %cst = arith.constant 1.000000e+00 : bf16
    %27 = vector.broadcast %cst : bf16 to vector<1x16x16xbf16>
    %28 = arith.subf %27, %26 : vector<1x16x16xbf16>
    %c0_2 = arith.constant 0 : index
    %c0_3 = arith.constant 0 : index
    %c0_4 = arith.constant 0 : index
    %29 = vector.load %arg2[%c0_2, %c0_3, %c0_4] : memref<1x16x16xbf16, #tpu.memory_space<vmem>>, vector<1x16x16xbf16>
    tpu.vector_store %arg2[%c0_2, %c0_3, %c0_4], %28 {strides = array<i32>} : memref<1x16x16xbf16, #tpu.memory_space<vmem>>, vector<1x16x16xbf16>,
    %30 = arith.extf %28 : vector<1x16x16xbf16> to vector<1x16x16xf32>
    %31 = vector.shape_cast %30 : vector<1x16x16xf32> to vector<1x1x16x16xf32>
    %cst_5 = arith.constant dense<0.000000e+00> : vector<1xf32>
    %32 = vector.multi_reduction <add>, %31, %cst_5 [1, 2, 3] : vector<1x1x16x16xf32> to vector<1xf32>
    %33 = vector.shape_cast %32 : vector<1xf32> to vector<1x1x1x1xf32>
    %34 = vector.extract %33[0, 0, 0, 0] : f32 from vector<1x1x1x1xf32>
    %35 = vector.broadcast %34 : f32 to vector<1x8x128xf32>
    %c0_6 = arith.constant 0 : index
    %c0_7 = arith.constant 0 : index
    %c0_8 = arith.constant 0 : index
    %36 = vector.load %arg3[%c0_6, %c0_7, %c0_8] : memref<1x8x128xf32, #tpu.memory_space<vmem>>, vector<1x8x128xf32>
    tpu.vector_store %arg3[%c0_6, %c0_7, %c0_8], %35 {strides = array<i32>} : memref<1x8x128xf32, #tpu.memory_space<vmem>>, vector<1x8x128xf32>,
    return
  }
  func.func @transform_0(%arg0: i32) -> (i32, i32, i32) {
    %c0_i32 = arith.constant 0 : i32
    %c0_i32_0 = arith.constant 0 : i32
    %c0_i32_1 = arith.constant 0 : i32
    return %arg0, %c0_i32, %c0_i32_0 : i32, i32, i32
  }
  func.func @transform_1(%arg0: i32) -> (i32, i32, i32) {
    %c0_i32 = arith.constant 0 : i32
    %c0_i32_0 = arith.constant 0 : i32
    %c0_i32_1 = arith.constant 0 : i32
    return %arg0, %c0_i32, %c0_i32_0 : i32, i32, i32
  }
  func.func @transform_2(%arg0: i32) -> (i32, i32, i32) {
    %c0_i32 = arith.constant 0 : i32
    %c0_i32_0 = arith.constant 0 : i32
    %c0_i32_1 = arith.constant 0 : i32
    return %arg0, %c0_i32, %c0_i32_0 : i32, i32, i32
  }
}

module attributes {stable_mosaic.version = 11 : i64} {
  func.func @_apply_kernel(%arg0: i32, %arg1: i32, %arg2: memref<1xf32, #tpu.memory_space<smem>>, %arg3: memref<1x4x256xf32, #tpu.memory_space<vmem>>, %arg4: memref<1x1x256xbf16, #tpu.memory_space<vmem>>, %arg5: memref<1x4x256xf32, #tpu.memory_space<vmem>>) attributes {dimension_semantics = [#tpu.dimension_semantics<parallel>, #tpu.dimension_semantics<parallel>], iteration_bounds = array<i64: 2, 1>, scalar_prefetch = 0 : i64, scratch_operands = 0 : i64, tpu.core_type = #tpu.core_type<tc>, window_params = [{transform_indices = @transform_0, window_bounds = array<i64: 1>}, {transform_indices = @transform_1, window_bounds = array<i64: 1, 4, 256>}, {transform_indices = @transform_2, window_bounds = array<i64: 1, 1, 256>}, {transform_indices = @transform_3, window_bounds = array<i64: 1, 4, 256>}]} {
    %c0 = arith.constant 0 : index
    %c0_0 = arith.constant 0 : index
    %c0_1 = arith.constant 0 : index
    %0 = vector.load %arg4[%c0, %c0_0, %c0_1] : memref<1x1x256xbf16, #tpu.memory_space<vmem>>, vector<1x1x256xbf16>
    %1 = arith.extf %0 : vector<1x1x256xbf16> to vector<1x1x256xf32>
    %c0_2 = arith.constant 0 : index
    %2 = memref.load %arg2[%c0_2] : memref<1xf32, #tpu.memory_space<smem>>
    %3 = vector.broadcast %2 : f32 to vector<1x1x256xf32>
    %4 = arith.mulf %1, %3 : vector<1x1x256xf32>
    %c0_3 = arith.constant 0 : index
    %c0_4 = arith.constant 0 : index
    %c0_5 = arith.constant 0 : index
    %5 = vector.load %arg3[%c0_3, %c0_4, %c0_5] : memref<1x4x256xf32, #tpu.memory_space<vmem>>, vector<1x4x256xf32>
    %6 = vector.broadcast %4 : vector<1x1x256xf32> to vector<1x4x256xf32>
    %7 = arith.mulf %5, %6 : vector<1x4x256xf32>
    %c0_6 = arith.constant 0 : index
    %c0_7 = arith.constant 0 : index
    %c0_8 = arith.constant 0 : index
    %8 = vector.load %arg5[%c0_6, %c0_7, %c0_8] : memref<1x4x256xf32, #tpu.memory_space<vmem>>, vector<1x4x256xf32>
    tpu.vector_store %arg5[%c0_6, %c0_7, %c0_8], %7 {strides = array<i32>} : memref<1x4x256xf32, #tpu.memory_space<vmem>>, vector<1x4x256xf32>,
    return
  }
  func.func @transform_0(%arg0: i32, %arg1: i32) -> i32 {
    %c0_i32 = arith.constant 0 : i32
    %c0_i32_0 = arith.constant 0 : i32
    return %c0_i32 : i32
  }
  func.func @transform_1(%arg0: i32, %arg1: i32) -> (i32, i32, i32) {
    %c0_i32 = arith.constant 0 : i32
    %c0_i32_0 = arith.constant 0 : i32
    return %arg0, %arg1, %c0_i32 : i32, i32, i32
  }
  func.func @transform_2(%arg0: i32, %arg1: i32) -> (i32, i32, i32) {
    %c0_i32 = arith.constant 0 : i32
    %c0_i32_0 = arith.constant 0 : i32
    %c0_i32_1 = arith.constant 0 : i32
    return %arg0, %c0_i32, %c0_i32_0 : i32, i32, i32
  }
  func.func @transform_3(%arg0: i32, %arg1: i32) -> (i32, i32, i32) {
    %c0_i32 = arith.constant 0 : i32
    %c0_i32_0 = arith.constant 0 : i32
    return %arg0, %arg1, %c0_i32 : i32, i32, i32
  }
}

</mosaic_0001>

<llo_original>
// kernel: dropblock2d.3
$region0: #{dropblock2d.3}
  #allocation0 [shape = 'u32[]', space=smem, size = 0x4, offset = 0x4, fixed_abs, tag = 'smem constant byte address 0x4 - core index']
  #allocation1 [shape = 'u32[72,128]{1,0:T(1,128)}', space=vmem, size = 0x9000, scoped, tag = 'internal scratch']
  #allocation2 [shape = 'f32[1]{0:T(128)S(6)}', space=smem, size = 0x200, scoped, tag = 'scoped memory for dropblock2d.3']
  %s0 = inlined_call_operand.<no memory space> [shape: f32[1], index: 0, kind: input, shape index: {}]
  %s1 = inlined_call_operand.vmem [shape: f32[2,4,256], index: 1, kind: input, shape index: {}]
  %s2 = inlined_call_operand.vmem [shape: bf16[2,1,256], index: 2, kind: input, shape index: {}]
  %s3 = inlined_call_operand.vmem [shape: f32[2,4,256], index: 3, kind: output, shape index: {}]
  %s4 = sld [smem:[#allocation0]]
  $region45: #{dropblock2d.3} parent=0
    _
  %s6 = ssub.s32 1, %s4
  %s7 = scalar_select 0, %s6, %s4
  %8 = sst [smem:[#allocation2]] %s0
  loop: start=0, step=1, limit=4
  $region2: #{dropblock2d.3} parent=0 // loop_pre_header
    _
  $region3: #{dropblock2d.3} parent=0 // loop_header
    %s10 = sphi 0, %s14
    %p11 = scmp.ge.s32.totalorder %s10, 4
    %s17 = sphi 0, %s29
    %s18 = sphi 0, %s25
    %s19 = sphi 0, %s17
    %s20 = sphi 0, %s18
    %s21 = sphi 0, %s19
    %s22 = sphi 0, %s20
    %s30 = sphi 0, %s30
    %s32 = sphi 0, %s30
    %s33 = sphi 0, %s32
    %s47 = sphi 0, %s33
    %s55 = sphi 0, %s57
    %s58 = sphi 0, %s55
    %s59 = sphi 0, %s58
    %s75 = sphi 0, %s59
    %s81 = sphi 0, %s83
    %s84 = sphi 0, %s81
    %s85 = sphi 0, %s84
    %s101 = sphi 0, %s85
    %s109 = sphi 0, %s111
    %s112 = sphi 0, %s109
    %s113 = sphi 0, %s112
    %s129 = sphi 0, %s113
  $region4: #{dropblock2d.3} parent=0 // loop_header_branch
    %13 = sbr.rel (%p11) target = $region8
  $region5: #{dropblock2d.3} parent=0 // loop_body
    %s15 = ssub.s32 %s10, 1
    %s16 = ssub.s32 %s10, 2
    %s23 = sadd.s32 1, %s18
    %p24 = scmp.ge.s32.totalorder %s23, 1
    %s25 = scalar_select %p24, 0, %s23
    %s26 = sadd.s32 1, %s17
    %s27 = scalar_select %p24, %s26, %s17
    %p28 = scmp.ge.s32.totalorder %s27, 2
    %s29 = scalar_select %p28, 0, %s27
    %s31 = sadd.s32 %s30, 1
    %p34 = scmp.eq.s32.totalorder %s10, 1
    %p35 = scmp.ne.s32.totalorder %s30, %s32
    %p36 = scmp.eq.s32.totalorder %s10, 0
    %p37 = por %p35, %p36
    %p38 = scmp.ne.s32.totalorder %s30, %s32
    %p39 = scmp.eq.s32.totalorder %s15, 1
    %p40 = por %p38, %p39
    %p41 = scmp.ne.s32.totalorder %s32, %s33
    %p42 = scmp.eq.s32.totalorder %s15, 0
    %p43 = por %p41, %p42
    %p44 = scmp.ne.s32.totalorder %s32, %s33
    %p45 = scmp.eq.s32.totalorder %s16, 1
    %p46 = por %p44, %p45
    %p48 = scmp.ne.s32.totalorder %s33, %s47
    %p49 = scmp.eq.s32.totalorder %s16, 0
    %p50 = por %p48, %p49
    %s51 = ssub.s32 %s17, %s29
    %s52 = ssub.s32 %s18, %s25
    %s53 = sor.u32 %s51, %s52
    %p54 = scmp.eq.s32.totalorder %s53, 0
    %s56 = sadd.s32 %s55, 1
    %s57 = scalar_select %p54, %s55, %s56
    %p60 = pneg %p54
    %p61 = scmp.eq.s32.totalorder %s10, 1
    %p62 = por %p60, %p61
    %p63 = scmp.ne.s32.totalorder %s55, %s58
    %p64 = scmp.eq.s32.totalorder %s10, 0
    %p65 = por %p63, %p64
    %p66 = scmp.ne.s32.totalorder %s55, %s58
    %p67 = scmp.eq.s32.totalorder %s15, 1
    %p68 = por %p66, %p67
    %p69 = scmp.ne.s32.totalorder %s58, %s59
    %p70 = scmp.eq.s32.totalorder %s15, 0
    %p71 = por %p69, %p70
    %p72 = scmp.ne.s32.totalorder %s58, %s59
    %p73 = scmp.eq.s32.totalorder %s16, 1
    %p74 = por %p72, %p73
    %p76 = scmp.ne.s32.totalorder %s59, %s75
    %p77 = scmp.eq.s32.totalorder %s16, 0
    %p78 = por %p76, %p77
    %s79 = ssub.s32 %s17, %s29
    %p80 = scmp.eq.s32.totalorder %s79, 0
    %s82 = sadd.s32 %s81, 1
    %s83 = scalar_select %p80, %s81, %s82
    %p86 = pneg %p80
    %p87 = scmp.eq.s32.totalorder %s10, 1
    %p88 = por %p86, %p87
    %p89 = scmp.ne.s32.totalorder %s81, %s84
    %p90 = scmp.eq.s32.totalorder %s10, 0
    %p91 = por %p89, %p90
    %p92 = scmp.ne.s32.totalorder %s81, %s84
    %p93 = scmp.eq.s32.totalorder %s15, 1
    %p94 = por %p92, %p93
    %p95 = scmp.ne.s32.totalorder %s84, %s85
    %p96 = scmp.eq.s32.totalorder %s15, 0
    %p97 = por %p95, %p96
    %p98 = scmp.ne.s32.totalorder %s84, %s85
    %p99 = scmp.eq.s32.totalorder %s16, 1
    %p100 = por %p98, %p99
    %p102 = scmp.ne.s32.totalorder %s85, %s101
    %p103 = scmp.eq.s32.totalorder %s16, 0
    %p104 = por %p102, %p103
    %s105 = ssub.s32 %s17, %s29
    %s106 = ssub.s32 %s18, %s25
    %s107 = sor.u32 %s105, %s106
    %p108 = scmp.eq.s32.totalorder %s107, 0
    %s110 = sadd.s32 %s109, 1
    %s111 = scalar_select %p108, %s109, %s110
    %p114 = pneg %p108
    %p115 = scmp.eq.s32.totalorder %s10, 1
    %p116 = por %p114, %p115
    %p117 = scmp.ne.s32.totalorder %s109, %s112
    %p118 = scmp.eq.s32.totalorder %s10, 0
    %p119 = por %p117, %p118
    %p120 = scmp.ne.s32.totalorder %s109, %s112
    %p121 = scmp.eq.s32.totalorder %s15, 1
    %p122 = por %p120, %p121
    %p123 = scmp.ne.s32.totalorder %s112, %s113
    %p124 = scmp.eq.s32.totalorder %s15, 0
    %p125 = por %p123, %p124
    %p126 = scmp.ne.s32.totalorder %s112, %s113
    %p127 = scmp.eq.s32.totalorder %s16, 1
    %p128 = por %p126, %p127
    %p130 = scmp.ne.s32.totalorder %s113, %s129
    %p131 = scmp.eq.s32.totalorder %s16, 0
    %p132 = por %p130, %p131
    %p133 = scmp.le.s32.totalorder 1, %s10
    %p134 = scmp.lt.s32.totalorder %s10, 3
    %p135 = pnand %p133, %p134
    %p136 = pneg %p135
    // Predicated region
    $region9: #{dropblock2d.3} parent=5 // pred_check
      _
    $region10: #{dropblock2d.3} parent=5 // pred_check_branch
      %138 = sbr.rel (%p135) target = $region12
    $region11: #{dropblock2d.3} parent=5 // pred_region
      %s139 = ssub.s32 %s10, 1
      // Predicated region
      $region13: #{dropblock2d.3} parent=11 // pred_check
        %p140 = pneg %p43
      $region14: #{dropblock2d.3} parent=11 // pred_check_branch
        %142 = sbr.rel (%p140) target = $region16
      $region15: #{dropblock2d.3} parent=11 // pred_region
        _
      $region16: #{dropblock2d.3} parent=11 // pred_fallthru
        _
    $region12: #{dropblock2d.3} parent=5 // pred_fallthru
      _
    %p143 = scmp.lt.s32.totalorder %s10, 2
    // Predicated region
    $region17: #{dropblock2d.3} parent=5 // pred_check
      %p144 = pneg %p143
    $region18: #{dropblock2d.3} parent=5 // pred_check_branch
      %146 = sbr.rel (%p144) target = $region20
    $region19: #{dropblock2d.3} parent=5 // pred_region
      // Predicated region
      $region21: #{dropblock2d.3} parent=19 // pred_check
        %p147 = pneg %p65
      $region22: #{dropblock2d.3} parent=19 // pred_check_branch
        %149 = sbr.rel (%p147) target = $region24
      $region23: #{dropblock2d.3} parent=19 // pred_region
        %p150 = scmp.lt.s32.totalorder %s17, 1
        %s151 = scalar_select %p150, %s17, 1
        %p152 = scmp.lt.s32.totalorder %s18, 0
        %s153 = scalar_select %p152, %s18, 0
        %s154 = smul.addr %s153, 2
        %s155 = smul.addr %s151, 2
        %s156 = sadd.s32 %s154, %s155
        %s157 = smul.addr %s156, 4
        %s158 = scalar_lea.vmem %s1, %s157
      $region24: #{dropblock2d.3} parent=19 // pred_fallthru
        _
      // Predicated region
      $region25: #{dropblock2d.3} parent=19 // pred_check
        %p159 = pneg %p91
      $region26: #{dropblock2d.3} parent=19 // pred_check_branch
        %161 = sbr.rel (%p159) target = $region28
      $region27: #{dropblock2d.3} parent=19 // pred_region
        %p162 = scmp.lt.s32.totalorder %s17, 1
        %s163 = scalar_select %p162, %s17, 1
        %s164 = smul.addr %s163, 2
        %s165 = scalar_lea.vmem %s2, %s164
      $region28: #{dropblock2d.3} parent=19 // pred_fallthru
        _
    $region20: #{dropblock2d.3} parent=5 // pred_fallthru
      _
    %p166 = scmp.le.s32.totalorder 1, %s10
    %p167 = scmp.lt.s32.totalorder %s10, 3
    %p168 = pnand %p166, %p167
    %p169 = pneg %p168
    // Predicated region
    $region29: #{dropblock2d.3} parent=5 // pred_check
      _
    $region30: #{dropblock2d.3} parent=5 // pred_check_branch
      %171 = sbr.rel (%p168) target = $region32
    $region31: #{dropblock2d.3} parent=5 // pred_region
      %s172 = ssub.s32 %s10, 1
      %p173 = pneg %p43
      %p174 = pneg %p40
      %p175 = scmp.lt.s32.totalorder %s19, 1
      %s176 = scalar_select %p175, %s19, 1
      %p177 = scmp.lt.s32.totalorder %s20, 0
      %s178 = scalar_select %p177, %s20, 0
      %s179 = smul.addr %s178, 2
      %s180 = smul.addr %s176, 2
      %s181 = sadd.s32 %s179, %s180
      %s182 = smul.addr %s181, 4
      %s183 = scalar_lea.vmem %s1, %s182
      %p184 = pneg %p71
      %p185 = pneg %p68
      %p186 = scmp.lt.s32.totalorder %s19, 1
      %s187 = scalar_select %p186, %s19, 1
      %s188 = smul.addr %s187, 2
      %s189 = scalar_lea.vmem %s2, %s188
      %p190 = pneg %p97
      %p191 = pneg %p94
      %p192 = pneg %p125
      %p193 = pneg %p122
      %p194 = scmp.lt.s32.totalorder %s19, 1
      %s195 = scalar_select %p194, %s19, 1
      %p196 = scmp.lt.s32.totalorder %s20, 0
      %s197 = scalar_select %p196, %s20, 0
      %s198 = smul.addr %s197, 2
      %s199 = smul.addr %s195, 2
      %s200 = sadd.s32 %s198, %s199
      %s201 = smul.addr %s200, 4
      %s202 = scalar_lea.vmem %s3, %s201
      %p203 = scmp.lt.s32.totalorder %s19, 1
      %s204 = scalar_select %p203, %s19, 1
      %p205 = scmp.lt.s32.totalorder %s20, 0
      %s206 = scalar_select %p205, %s20, 0
      %s207 = smul.addr %s206, 2
      %s208 = smul.addr %s204, 2
      %s209 = sadd.s32 %s207, %s208
      %s210 = smul.addr %s209, 4
      %s211 = scalar_lea.vmem %s1, %s210
      %p212 = scmp.lt.s32.totalorder %s19, 1
      %s213 = scalar_select %p212, %s19, 1
      %s214 = smul.addr %s213, 2
      %s215 = scalar_lea.vmem %s2, %s214
      %p216 = scmp.lt.s32.totalorder %s19, 1
      %s217 = scalar_select %p216, %s19, 1
      %p218 = scmp.lt.s32.totalorder %s20, 0
      %s219 = scalar_select %p218, %s20, 0
      %s220 = smul.addr %s219, 2
      %s221 = smul.addr %s217, 2
      %s222 = sadd.s32 %s220, %s221
      %s223 = smul.addr %s222, 4
      %s224 = scalar_lea.vmem %s3, %s223
      %v225 = vld [vmem:[%s215] sm:$0x3]
      %v226 = vunpack.c.l.bf16 %v225
      %s227 = sld [smem:[#allocation2]]
      %v228 = vstv %s227
      %v229 = vmul.f32 %v226, %v228
      %v230 = vld [vmem:[%s211] sm:$0xff]
      %v232 = vperm.slane %v229, 0
      %v233 = vperm.slane %v229, 2
      %v236 = vperm.slane %v232, 0
      %v237 = vperm.slane %v233, 0
      %v240 = vrot.slane %v237, 4
      %vm241 = vcmask 1043456
      %v242 = vsel %vm241, %v236, %v240
      %v244 = vmul.f32 %v230, %v242
      %245 = vst [vmem:[%s224] sm:$0xff] %v244
      %p246 = scmp.lt.s32.totalorder %s19, 1
      %s247 = scalar_select %p246, %s19, 1
      %p248 = scmp.lt.s32.totalorder %s20, 0
      %s249 = scalar_select %p248, %s20, 0
      %s250 = smul.addr %s249, 2
      %s251 = smul.addr %s247, 2
      %s252 = sadd.s32 %s250, %s251
      %s253 = smul.addr %s252, 4
      %s254 = scalar_lea.vmem %s3, %s253
      // Predicated region
      $region33: #{dropblock2d.3} parent=31 // pred_check
        %p255 = pneg %p122
      $region34: #{dropblock2d.3} parent=31 // pred_check_branch
        %257 = sbr.rel (%p255) target = $region36
      $region35: #{dropblock2d.3} parent=31 // pred_region
        _
      $region36: #{dropblock2d.3} parent=31 // pred_fallthru
        _
    $region32: #{dropblock2d.3} parent=5 // pred_fallthru
      _
    %p258 = scmp.le.s32.totalorder 2, %s10
    // Predicated region
    $region37: #{dropblock2d.3} parent=5 // pred_check
      %p259 = pneg %p258
    $region38: #{dropblock2d.3} parent=5 // pred_check_branch
      %261 = sbr.rel (%p259) target = $region40
    $region39: #{dropblock2d.3} parent=5 // pred_region
      %s262 = ssub.s32 %s10, 2
      // Predicated region
      $region41: #{dropblock2d.3} parent=39 // pred_check
        %p263 = pneg %p128
      $region42: #{dropblock2d.3} parent=39 // pred_check_branch
        %265 = sbr.rel (%p263) target = $region44
      $region43: #{dropblock2d.3} parent=39 // pred_region
        %p266 = scmp.lt.s32.totalorder %s21, 1
        %s267 = scalar_select %p266, %s21, 1
        %p268 = scmp.lt.s32.totalorder %s22, 0
        %s269 = scalar_select %p268, %s22, 0
        %s270 = smul.addr %s269, 2
        %s271 = smul.addr %s267, 2
        %s272 = sadd.s32 %s270, %s271
        %s273 = smul.addr %s272, 4
        %s274 = scalar_lea.vmem %s3, %s273
      $region44: #{dropblock2d.3} parent=39 // pred_fallthru
        _
    $region40: #{dropblock2d.3} parent=5 // pred_fallthru
      _
  $region6: #{dropblock2d.3} parent=0 // loop_footer
    %s14 = sadd.s32 1, %s10
  $region7: #{dropblock2d.3} parent=0 // loop_footer_branch
    %9 = sbr.rel target = $region3
  $region8: #{dropblock2d.3} parent=0 // loop_exit
    _

// kernel: dropblock2d.2
$region0: #{dropblock2d.2}
  #allocation0 [shape = 'u32[]', space=smem, size = 0x4, offset = 0x4, fixed_abs, tag = 'smem constant byte address 0x4 - core index']
  #allocation1 [shape = 'u32[72,128]{1,0:T(1,128)}', space=vmem, size = 0x9000, scoped, tag = 'internal scratch']
  %s0 = inlined_call_operand.vmem [shape: bf16[2,22,22], index: 0, kind: input, shape index: {}]
  %s1 = inlined_call_operand.vmem [shape: bf16[2,16,16], index: 1, kind: output, shape index: {0}]
  %s2 = inlined_call_operand.vmem [shape: f32[2,8,128], index: 2, kind: output, shape index: {1}]
  %3 = xla_tuple %s1, %s2
  %s4 = sld [smem:[#allocation0]]
  $region45: #{dropblock2d.2} parent=0
    _
  %s6 = ssub.s32 1, %s4
  %s7 = scalar_select 0, %s6, %s4
  loop: start=0, step=1, limit=4
  $region2: #{dropblock2d.2} parent=0 // loop_pre_header
    _
  $region3: #{dropblock2d.2} parent=0 // loop_header
    %s9 = sphi 0, %s13
    %p10 = scmp.ge.s32.totalorder %s9, 4
    %s19 = sphi 0, %s21
    %s22 = sphi 0, %s19
    %s23 = sphi 0, %s22
    %s39 = sphi 0, %s23
    %s45 = sphi 0, %s47
    %s48 = sphi 0, %s45
    %s49 = sphi 0, %s48
    %s65 = sphi 0, %s49
    %s71 = sphi 0, %s73
    %s74 = sphi 0, %s71
    %s75 = sphi 0, %s74
    %s91 = sphi 0, %s75
  $region4: #{dropblock2d.2} parent=0 // loop_header_branch
    %12 = sbr.rel (%p10) target = $region8
  $region5: #{dropblock2d.2} parent=0 // loop_body
    %s14 = ssub.s32 %s9, 1
    %s15 = ssub.s32 %s9, 2
    %s16 = sadd.s32 %s9, 1
    %s17 = ssub.s32 %s9, %s16
    %p18 = scmp.eq.s32.totalorder %s17, 0
    %s20 = sadd.s32 %s19, 1
    %s21 = scalar_select %p18, %s19, %s20
    %p24 = pneg %p18
    %p25 = scmp.eq.s32.totalorder %s9, 1
    %p26 = por %p24, %p25
    %p27 = scmp.ne.s32.totalorder %s19, %s22
    %p28 = scmp.eq.s32.totalorder %s9, 0
    %p29 = por %p27, %p28
    %p30 = scmp.ne.s32.totalorder %s19, %s22
    %p31 = scmp.eq.s32.totalorder %s14, 1
    %p32 = por %p30, %p31
    %p33 = scmp.ne.s32.totalorder %s22, %s23
    %p34 = scmp.eq.s32.totalorder %s14, 0
    %p35 = por %p33, %p34
    %p36 = scmp.ne.s32.totalorder %s22, %s23
    %p37 = scmp.eq.s32.totalorder %s15, 1
    %p38 = por %p36, %p37
    %p40 = scmp.ne.s32.totalorder %s23, %s39
    %p41 = scmp.eq.s32.totalorder %s15, 0
    %p42 = por %p40, %p41
    %s43 = ssub.s32 %s9, %s16
    %p44 = scmp.eq.s32.totalorder %s43, 0
    %s46 = sadd.s32 %s45, 1
    %s47 = scalar_select %p44, %s45, %s46
    %p50 = pneg %p44
    %p51 = scmp.eq.s32.totalorder %s9, 1
    %p52 = por %p50, %p51
    %p53 = scmp.ne.s32.totalorder %s45, %s48
    %p54 = scmp.eq.s32.totalorder %s9, 0
    %p55 = por %p53, %p54
    %p56 = scmp.ne.s32.totalorder %s45, %s48
    %p57 = scmp.eq.s32.totalorder %s14, 1
    %p58 = por %p56, %p57
    %p59 = scmp.ne.s32.totalorder %s48, %s49
    %p60 = scmp.eq.s32.totalorder %s14, 0
    %p61 = por %p59, %p60
    %p62 = scmp.ne.s32.totalorder %s48, %s49
    %p63 = scmp.eq.s32.totalorder %s15, 1
    %p64 = por %p62, %p63
    %p66 = scmp.ne.s32.totalorder %s49, %s65
    %p67 = scmp.eq.s32.totalorder %s15, 0
    %p68 = por %p66, %p67
    %s69 = ssub.s32 %s9, %s16
    %p70 = scmp.eq.s32.totalorder %s69, 0
    %s72 = sadd.s32 %s71, 1
    %s73 = scalar_select %p70, %s71, %s72
    %p76 = pneg %p70
    %p77 = scmp.eq.s32.totalorder %s9, 1
    %p78 = por %p76, %p77
    %p79 = scmp.ne.s32.totalorder %s71, %s74
    %p80 = scmp.eq.s32.totalorder %s9, 0
    %p81 = por %p79, %p80
    %p82 = scmp.ne.s32.totalorder %s71, %s74
    %p83 = scmp.eq.s32.totalorder %s14, 1
    %p84 = por %p82, %p83
    %p85 = scmp.ne.s32.totalorder %s74, %s75
    %p86 = scmp.eq.s32.totalorder %s14, 0
    %p87 = por %p85, %p86
    %p88 = scmp.ne.s32.totalorder %s74, %s75
    %p89 = scmp.eq.s32.totalorder %s15, 1
    %p90 = por %p88, %p89
    %p92 = scmp.ne.s32.totalorder %s75, %s91
    %p93 = scmp.eq.s32.totalorder %s15, 0
    %p94 = por %p92, %p93
    %p95 = scmp.le.s32.totalorder 1, %s9
    %p96 = scmp.lt.s32.totalorder %s9, 3
    %p97 = pnand %p95, %p96
    %p98 = pneg %p97
    // Predicated region
    $region9: #{dropblock2d.2} parent=5 // pred_check
      _
    $region10: #{dropblock2d.2} parent=5 // pred_check_branch
      %100 = sbr.rel (%p97) target = $region12
    $region11: #{dropblock2d.2} parent=5 // pred_region
      %s101 = ssub.s32 %s9, 1
    $region12: #{dropblock2d.2} parent=5 // pred_fallthru
      _
    %p102 = scmp.lt.s32.totalorder %s9, 2
    // Predicated region
    $region13: #{dropblock2d.2} parent=5 // pred_check
      %p103 = pneg %p102
    $region14: #{dropblock2d.2} parent=5 // pred_check_branch
      %105 = sbr.rel (%p103) target = $region16
    $region15: #{dropblock2d.2} parent=5 // pred_region
      // Predicated region
      $region17: #{dropblock2d.2} parent=15 // pred_check
        %p106 = pneg %p29
      $region18: #{dropblock2d.2} parent=15 // pred_check_branch
        %108 = sbr.rel (%p106) target = $region20
      $region19: #{dropblock2d.2} parent=15 // pred_region
        %p109 = scmp.lt.s32.totalorder %s9, 1
        %s110 = scalar_select %p109, %s9, 1
        %s111 = smul.addr %s110, 3
        %s112 = smul.addr %s111, 4
        %s113 = scalar_lea.vmem %s0, %s112
      $region20: #{dropblock2d.2} parent=15 // pred_fallthru
        _
    $region16: #{dropblock2d.2} parent=5 // pred_fallthru
      _
    %p114 = scmp.le.s32.totalorder 1, %s9
    %p115 = scmp.lt.s32.totalorder %s9, 3
    %p116 = pnand %p114, %p115
    %p117 = pneg %p116
    // Predicated region
    $region21: #{dropblock2d.2} parent=5 // pred_check
      _
    $region22: #{dropblock2d.2} parent=5 // pred_check_branch
      %119 = sbr.rel (%p116) target = $region24
    $region23: #{dropblock2d.2} parent=5 // pred_region
      %s120 = ssub.s32 %s9, 1
      %p121 = scmp.lt.s32.totalorder %s14, 1
      %s122 = scalar_select %p121, %s14, 1
      %s123 = smul.addr %s122, 3
      %s124 = smul.addr %s123, 4
      %s125 = scalar_lea.vmem %s0, %s124
      %p126 = pneg %p35
      %p127 = pneg %p32
      %p128 = pneg %p61
      %p129 = pneg %p58
      %p130 = scmp.lt.s32.totalorder %s14, 1
      %s131 = scalar_select %p130, %s14, 1
      %s132 = smul.addr %s131, 2
      %s133 = smul.addr %s132, 4
      %s134 = scalar_lea.vmem %s1, %s133
      %p135 = pneg %p87
      %p136 = pneg %p84
      %p137 = scmp.lt.s32.totalorder %s14, 1
      %s138 = scalar_select %p137, %s14, 1
      %s139 = smul.addr %s138, 8
      %s140 = scalar_lea.vmem %s2, %s139
      %p141 = scmp.lt.s32.totalorder %s14, 1
      %s142 = scalar_select %p141, %s14, 1
      %s143 = smul.addr %s142, 3
      %s144 = smul.addr %s143, 4
      %s145 = scalar_lea.vmem %s0, %s144
      %p146 = scmp.lt.s32.totalorder %s14, 1
      %s147 = scalar_select %p146, %s14, 1
      %s148 = smul.addr %s147, 2
      %s149 = smul.addr %s148, 4
      %s150 = scalar_lea.vmem %s1, %s149
      %p151 = scmp.lt.s32.totalorder %s14, 1
      %s152 = scalar_select %p151, %s14, 1
      %s153 = smul.addr %s152, 8
      %s154 = scalar_lea.vmem %s2, %s153
      %v155 = vld [vmem:[%s145] sm:$0xf]
      %v156 = vld [vmem:[%s145 + $0x4] sm:$0xf]
      %v157 = vld [vmem:[%s145 + $0x8] sm:$0x7]
      %v158 = vunpack.c.l.bf16 %v155
      %v159 = vunpack.c.l.bf16 %v156
      %v160 = vunpack.c.l.bf16 %v157
      %vm164 = vcmask 1046528
      %v165 = vrot.slane %v158, 1
      %v166 = vrot.slane %v159, 1
      %v167 = vsel %vm164, %v165, %v166
      %v168 = vrot.slane %v160, 1
      %v169 = vsel %vm164, %v166, %v168
      %v172 = vmax.f32 %v158, %v167
      %v173 = vmax.f32 %v159, %v169
      %v174 = vpack.c.bf16 %v172, %v172
      %v175 = vpack.c.bf16 %v173, %v173
      %v176 = vunpack.c.l.bf16 %v174
      %v177 = vunpack.c.l.bf16 %v175
      %vm178 = vcmask 1045504
      %v179 = vrot.slane %v158, 2
      %v180 = vrot.slane %v159, 2
      %v181 = vsel %vm178, %v179, %v180
      %v182 = vrot.slane %v160, 2
      %v183 = vsel %vm178, %v180, %v182
      %v186 = vmax.f32 %v176, %v181
      %v187 = vmax.f32 %v177, %v183
      %v188 = vpack.c.bf16 %v186, %v186
      %v189 = vpack.c.bf16 %v187, %v187
      %v190 = vunpack.c.l.bf16 %v188
      %v191 = vunpack.c.l.bf16 %v189
      %vm192 = vcmask 1044480
      %v193 = vrot.slane %v158, 3
      %v194 = vrot.slane %v159, 3
      %v195 = vsel %vm192, %v193, %v194
      %v196 = vrot.slane %v160, 3
      %v197 = vsel %vm192, %v194, %v196
      %v200 = vmax.f32 %v190, %v195
      %v201 = vmax.f32 %v191, %v197
      %v202 = vpack.c.bf16 %v200, %v200
      %v203 = vpack.c.bf16 %v201, %v201
      %v204 = vunpack.c.l.bf16 %v202
      %v205 = vunpack.c.l.bf16 %v203
      %vm206 = vcmask 1043456
      %v207 = vrot.slane %v158, 4
      %v208 = vrot.slane %v159, 4
      %v209 = vsel %vm206, %v207, %v208
      %v210 = vrot.slane %v160, 4
      %v211 = vsel %vm206, %v208, %v210
      %v214 = vmax.f32 %v204, %v209
      %v215 = vmax.f32 %v205, %v211
      %v216 = vpack.c.bf16 %v214, %v214
      %v217 = vpack.c.bf16 %v215, %v215
      %v218 = vunpack.c.l.bf16 %v216
      %v219 = vunpack.c.l.bf16 %v217
      %vm220 = vcmask 1042432
      %v221 = vrot.slane %v158, 5
      %v222 = vrot.slane %v159, 5
      %v223 = vsel %vm220, %v221, %v222
      %v224 = vrot.slane %v160, 5
      %v225 = vsel %vm220, %v222, %v224
      %v228 = vmax.f32 %v218, %v223
      %v229 = vmax.f32 %v219, %v225
      %v230 = vpack.c.bf16 %v228, %v228
      %v231 = vpack.c.bf16 %v229, %v229
      %v232 = vunpack.c.l.bf16 %v230
      %v233 = vunpack.c.l.bf16 %v231
      %vm234 = vcmask 1041408
      %v235 = vrot.slane %v158, 6
      %v236 = vrot.slane %v159, 6
      %v237 = vsel %vm234, %v235, %v236
      %v238 = vrot.slane %v160, 6
      %v239 = vsel %vm234, %v236, %v238
      %v242 = vmax.f32 %v232, %v237
      %v243 = vmax.f32 %v233, %v239
      %v244 = vpack.c.bf16 %v242, %v242
      %v245 = vpack.c.bf16 %v243, %v243
      %v246 = vunpack.c.l.bf16 %v244
      %v247 = vunpack.c.l.bf16 %v245
      %250 = vrot.lane.b32.xlu0 %v246, 127
      %v251 = vpop.permute.xlu0 %250
      %252 = vrot.lane.b32.xlu0 %v247, 127
      %v253 = vpop.permute.xlu0 %252
      %v256 = vmax.f32 %v246, %v251
      %v257 = vmax.f32 %v247, %v253
      %v258 = vpack.c.bf16 %v256, %v256
      %v259 = vpack.c.bf16 %v257, %v257
      %v260 = vunpack.c.l.bf16 %v258
      %v261 = vunpack.c.l.bf16 %v259
      %262 = vrot.lane.b32.xlu0 %v246, 126
      %v263 = vpop.permute.xlu0 %262
      %264 = vrot.lane.b32.xlu0 %v247, 126
      %v265 = vpop.permute.xlu0 %264
      %v268 = vmax.f32 %v260, %v263
      %v269 = vmax.f32 %v261, %v265
      %v270 = vpack.c.bf16 %v268, %v268
      %v271 = vpack.c.bf16 %v269, %v269
      %v272 = vunpack.c.l.bf16 %v270
      %v273 = vunpack.c.l.bf16 %v271
      %274 = vrot.lane.b32.xlu0 %v246, 125
      %v275 = vpop.permute.xlu0 %274
      %276 = vrot.lane.b32.xlu0 %v247, 125
      %v277 = vpop.permute.xlu0 %276
      %v280 = vmax.f32 %v272, %v275
      %v281 = vmax.f32 %v273, %v277
      %v282 = vpack.c.bf16 %v280, %v280
      %v283 = vpack.c.bf16 %v281, %v281
      %v284 = vunpack.c.l.bf16 %v282
      %v285 = vunpack.c.l.bf16 %v283
      %286 = vrot.lane.b32.xlu0 %v246, 124
      %v287 = vpop.permute.xlu0 %286
      %288 = vrot.lane.b32.xlu0 %v247, 124
      %v289 = vpop.permute.xlu0 %288
      %v292 = vmax.f32 %v284, %v287
      %v293 = vmax.f32 %v285, %v289
      %v294 = vpack.c.bf16 %v292, %v292
      %v295 = vpack.c.bf16 %v293, %v293
      %v296 = vunpack.c.l.bf16 %v294
      %v297 = vunpack.c.l.bf16 %v295
      %298 = vrot.lane.b32.xlu0 %v246, 123
      %v299 = vpop.permute.xlu0 %298
      %300 = vrot.lane.b32.xlu0 %v247, 123
      %v301 = vpop.permute.xlu0 %300
      %v304 = vmax.f32 %v296, %v299
      %v305 = vmax.f32 %v297, %v301
      %v306 = vpack.c.bf16 %v304, %v304
      %v307 = vpack.c.bf16 %v305, %v305
      %v308 = vunpack.c.l.bf16 %v306
      %v309 = vunpack.c.l.bf16 %v307
      %310 = vrot.lane.b32.xlu0 %v246, 122
      %v311 = vpop.permute.xlu0 %310
      %312 = vrot.lane.b32.xlu0 %v247, 122
      %v313 = vpop.permute.xlu0 %312
      %v316 = vmax.f32 %v308, %v311
      %v317 = vmax.f32 %v309, %v313
      %v318 = vpack.c.bf16 %v316, %v316
      %v319 = vpack.c.bf16 %v317, %v317
      %v320 = vunpack.c.l.bf16 %v318
      %v321 = vunpack.c.l.bf16 %v319
      %v322 = vsub.f32 1.0, %v320
      %v323 = vsub.f32 1.0, %v321
      %v324 = vpack.c.bf16 %v322, %v322
      %v325 = vpack.c.bf16 %v323, %v323
      %vm326 = vcmask 125952
      %327 = vst.msk [vmem:[%s150] sm:$0xf] %vm326, %v324
      %328 = vst.msk [vmem:[%s150 + $0x4] sm:$0xf] %vm326, %v325
      %v329 = vunpack.c.l.bf16 %v324
      %v330 = vunpack.c.l.bf16 %v325
      %vm331 = vcmask 130048
      %v332 = vsel %vm331, %v329, 0.0
      %v333 = vsel %vm331, %v330, 0.0
      %v334 = vadd.f32 %v332, %v333
      %335 = vadd.xlane.f32.xlu0 %v334
      %v336 = vpop.xlane.xlu0 %335
      %v337 = vrot.slane %v336, 4
      %v338 = vadd.f32 %v336, %v337
      %v339 = vrot.slane %v338, 2
      %v340 = vadd.f32 %v338, %v339
      %v341 = vrot.slane %v340, 1
      %v342 = vadd.f32 %v340, %v341
      %s343 = vtos %v342
      %v344 = vstv %s343
      %345 = vst [vmem:[%s154] sm:$0xff] %v344
      %p346 = scmp.lt.s32.totalorder %s14, 1
      %s347 = scalar_select %p346, %s14, 1
      %s348 = smul.addr %s347, 2
      %s349 = smul.addr %s348, 4
      %s350 = scalar_lea.vmem %s1, %s349
      %p351 = scmp.lt.s32.totalorder %s14, 1
      %s352 = scalar_select %p351, %s14, 1
      %s353 = smul.addr %s352, 8
      %s354 = scalar_lea.vmem %s2, %s353
      // Predicated region
      $region25: #{dropblock2d.2} parent=23 // pred_check
        %p355 = pneg %p58
      $region26: #{dropblock2d.2} parent=23 // pred_check_branch
        %357 = sbr.rel (%p355) target = $region28
      $region27: #{dropblock2d.2} parent=23 // pred_region
        _
      $region28: #{dropblock2d.2} parent=23 // pred_fallthru
        _
      // Predicated region
      $region29: #{dropblock2d.2} parent=23 // pred_check
        %p358 = pneg %p84
      $region30: #{dropblock2d.2} parent=23 // pred_check_branch
        %360 = sbr.rel (%p358) target = $region32
      $region31: #{dropblock2d.2} parent=23 // pred_region
        _
      $region32: #{dropblock2d.2} parent=23 // pred_fallthru
        _
    $region24: #{dropblock2d.2} parent=5 // pred_fallthru
      _
    %p361 = scmp.le.s32.totalorder 2, %s9
    // Predicated region
    $region33: #{dropblock2d.2} parent=5 // pred_check
      %p362 = pneg %p361
    $region34: #{dropblock2d.2} parent=5 // pred_check_branch
      %364 = sbr.rel (%p362) target = $region36
    $region35: #{dropblock2d.2} parent=5 // pred_region
      %s365 = ssub.s32 %s9, 2
      // Predicated region
      $region37: #{dropblock2d.2} parent=35 // pred_check
        %p366 = pneg %p64
      $region38: #{dropblock2d.2} parent=35 // pred_check_branch
        %368 = sbr.rel (%p366) target = $region40
      $region39: #{dropblock2d.2} parent=35 // pred_region
        %p369 = scmp.lt.s32.totalorder %s15, 1
        %s370 = scalar_select %p369, %s15, 1
        %s371 = smul.addr %s370, 2
        %s372 = smul.addr %s371, 4
        %s373 = scalar_lea.vmem %s1, %s372
      $region40: #{dropblock2d.2} parent=35 // pred_fallthru
        _
      // Predicated region
      $region41: #{dropblock2d.2} parent=35 // pred_check
        %p374 = pneg %p90
      $region42: #{dropblock2d.2} parent=35 // pred_check_branch
        %376 = sbr.rel (%p374) target = $region44
      $region43: #{dropblock2d.2} parent=35 // pred_region
        %p377 = scmp.lt.s32.totalorder %s15, 1
        %s378 = scalar_select %p377, %s15, 1
        %s379 = smul.addr %s378, 8
        %s380 = scalar_lea.vmem %s2, %s379
      $region44: #{dropblock2d.2} parent=35 // pred_fallthru
        _
    $region36: #{dropblock2d.2} parent=5 // pred_fallthru
      _
  $region6: #{dropblock2d.2} parent=0 // loop_footer
    %s13 = sadd.s32 1, %s9
  $region7: #{dropblock2d.2} parent=0 // loop_footer_branch
    %8 = sbr.rel target = $region3
  $region8: #{dropblock2d.2} parent=0 // loop_exit
    _

</llo_original>
